<compile_context>
chip_gen: v6e
topology: v6e:2x2x1
jax: 0.10.0
libtpu: 0.0.40
codegen_flags: <defaults>
</compile_context>

<pallas_src>
import math

import jax
import jax.numpy as jnp
from jax.experimental import pallas as pl
from jax.experimental.pallas import tpu as pltpu


def _round_up(x, m):
    return (x + m - 1) // m * m


def _linear_kernel(x_ref, wt_ref, b_ref, o_ref):
    """One (i, j, k) grid step of y = x @ W^T + b.

    x_ref:  (tm, tk) input tile in its native dtype; cast to bf16 here so the
            wrapper never pays a separate HBM cast pass.
    wt_ref: (tk, tn) bf16 tile of the pre-transposed weight W^T.
    b_ref:  (1, tn)  f32 bias tile.
    o_ref:  (tm, tn) f32 output tile.  Its block index does not depend on the
            K grid axis, so Pallas keeps it VMEM-resident across k and we
            accumulate straight into it (no acc scratch, no finalize copy).
    """
    k = pl.program_id(2)

    @pl.when(k == 0)
    def _init():
        # Fold the bias into the accumulator init; drops the finalize add.
        o_ref[...] = jnp.broadcast_to(b_ref[...], o_ref.shape)

    o_ref[...] += jnp.dot(
        x_ref[...].astype(jnp.bfloat16),
        wt_ref[...],
        preferred_element_type=jnp.float32,
    )


def _tpu_defaults():
    """Generation-aware default tiles and VMEM budget.

    Returns (tm, tn, tk, vmem_capacity_bytes, is_v7x).
    """
    kind = ""
    try:
        kind = jax.devices()[0].device_kind.lower()
    except Exception:
        pass
    is_v7 = "v7" in kind
    if is_v7:
        # v7x: 64 MiB VMEM / TC, ridge ~311 FLOP/B -> 768 tiles give AI ~384.
        tm, tn, tk, cap = 768, 768, 1024, 64 << 20
    elif "v6" in kind:
        # v6e: 128 MiB VMEM, ridge ~680 FLOP/B -> 1024 tiles give AI ~512.
        tm, tn, tk, cap = 1024, 1024, 1024, 128 << 20
    elif "v5" in kind:
        # v5e: ridge ~240 FLOP/B -> 512 tiles suffice; fat K steps (tk=1024)
        # amortize the per-step accumulator read-modify-write (1 vst slot).
        tm, tn, tk, cap = 512, 512, 1024, 128 << 20
    else:
        tm, tn, tk, cap = 512, 512, 1024, 64 << 20
    try:
        cap = pltpu.get_tpu_info().vmem_capacity_bytes
    except Exception:
        pass
    return tm, tn, tk, cap, is_v7


def prepare_linear_params(weight, bias=None):
    """One-time parameter preprocessing (hoisted out of the per-call path).

    weight: (out_channels, in_channels)  (torch.nn.Linear convention)
    bias:   (out_channels,) or None
    Returns (wt, b2) with wt: (in_channels, out_channels) bf16, b2: (1, O) f32.
    """
    out_ch, in_ch = weight.shape
    wt = jnp.asarray(weight, jnp.float32).T.astype(jnp.bfloat16)  # (K, O)
    if bias is None:
        b2 = jnp.zeros((1, out_ch), jnp.float32)
    else:
        b2 = jnp.asarray(bias, jnp.float32).reshape(1, out_ch)
    return wt, b2


def linear_pallas(x, wt, b2, *, tm=None, tn=None, tk=None):
    """Computes x @ W^T + b with a tiled Pallas TPU kernel.

    x:  (..., K) float (any number of leading dims, like F.linear)
    wt: (K, O)   bf16   pre-transposed weight from prepare_linear_params
    b2: (1, O)   float32 bias
    returns (..., O) with x.dtype. MXU operands are bf16 (f32 accumulation),
    so results match F.linear at ~bf16 operand precision.
    """
    orig_shape = x.shape
    K = orig_shape[-1]
    Kw, O = wt.shape
    assert K == Kw, f"in_channels mismatch: {K} vs {Kw}"
    out_dtype = x.dtype

    dm, dn, dk, vmem_cap, is_v7 = _tpu_defaults()
    tm = dm if tm is None else tm
    tn = dn if tn is None else tn
    tk = dk if tk is None else tk

    x2 = x.reshape(-1, K)
    N = x2.shape[0]

    # Clamp tiles.  tm (sublane dim) only needs a 16-row multiple, so tiny
    # batches are not blown up to 128 rows; tn/tk are lane dims (128-aligned).
    tm = min(tm, _round_up(N, 16))
    tn = min(tn, _round_up(O, 128))
    tk = min(tk, _round_up(K, 128))

    Np = _round_up(N, tm)
    Op = _round_up(O, tn)
    Kp = _round_up(K, tk)

    # v7x has 2 TensorCores: if the whole output fits in one (i, j) block,
    # split it so the "parallel" axes expose work for both cores.
    if is_v7 and (Np // tm) * (Op // tn) == 1:
        if Np >= 256 and Np % 256 == 0:
            tm = Np // 2
        elif Op >= 256 and Op % 256 == 0:
            tn = Op // 2

    # Pad only when shapes are actually unaligned (each jnp.pad is a full HBM
    # pass outside the kernel).  Zero-padding of K is benign for the matmul.
    xp = x2 if (Np, Kp) == (N, K) else jnp.pad(x2, ((0, Np - N), (0, Kp - K)))
    wtp = wt if (Kp, Op) == (Kw, O) else jnp.pad(wt, ((0, Kp - Kw), (0, Op - O)))
    bp = b2 if Op == O else jnp.pad(b2, ((0, 0), (0, Op - O)))

    grid = (Np // tm, Op // tn, Kp // tk)

    # ~25% headroom below physical VMEM for Mosaic internal scratch.
    vmem_limit = min(max(int(vmem_cap) * 3 // 4, 32 << 20), 128 << 20)

    out = pl.pallas_call(
        _linear_kernel,
        out_shape=jax.ShapeDtypeStruct((Np, Op), jnp.float32),
        grid_spec=pltpu.PrefetchScalarGridSpec(
            num_scalar_prefetch=0,
            grid=grid,
            in_specs=[
                # If a trace still shows exposed DMA on the K axis, add
                # pipeline_mode=pl.Buffered(3) to the x / W^T specs below.
                pl.BlockSpec((tm, tk), lambda i, j, k: (i, k)),  # x tile
                pl.BlockSpec((tk, tn), lambda i, j, k: (k, j)),  # W^T tile
                pl.BlockSpec((1, tn), lambda i, j, k: (0, j)),   # bias tile
            ],
            out_specs=pl.BlockSpec((tm, tn), lambda i, j, k: (i, j)),
        ),
        compiler_params=pltpu.CompilerParams(
            dimension_semantics=("parallel", "parallel", "arbitrary"),
            vmem_limit_bytes=vmem_limit,
        ),
    )(xp, wtp, bp)

    y = out
    if (Np, Op) != (N, O):
        y = y[:N, :O]
    if out_dtype != jnp.float32:
        y = y.astype(out_dtype)
    return y.reshape(*orig_shape[:-1], O)


def init_linear_params(key, in_channels, out_channels):
    """Deterministic init matching the module's defaults:
    weight: kaiming_uniform(fan=in_channels, a=sqrt(5)) -> U(-1/sqrt(fan), 1/sqrt(fan))
    bias:   inits.uniform(in_channels, bias)            -> U(-1/sqrt(fan), 1/sqrt(fan))
    """
    kw, kb = jax.random.split(key)
    w_bound = math.sqrt(6.0 / ((1.0 + 5.0) * in_channels))  # == 1/sqrt(in_channels)
    b_bound = 1.0 / math.sqrt(in_channels)
    weight = jax.random.uniform(
        kw, (out_channels, in_channels), jnp.float32, -w_bound, w_bound
    )
    bias = jax.random.uniform(
        kb, (out_channels,), jnp.float32, -b_bound, b_bound
    )
    return weight, bias


if __name__ == "__main__":
    key = jax.random.PRNGKey(0)
    k_x, k_p = jax.random.split(key)

    N, in_channels, out_channels = 8, 32, 16
    x = jax.random.normal(k_x, (N, in_channels), jnp.float32)
    weight, bias = init_linear_params(k_p, in_channels, out_channels)

    # One-time parameter prep (transpose + bf16 cast hoisted out of the call).
    wt, b2 = prepare_linear_params(weight, bias)

    y = linear_pallas(x, wt, b2)
    y = jax.block_until_ready(y)
    assert y.shape == (N, out_channels)

    # Strict check against a reference using the same bf16-rounded operands.
    x_bf = x.astype(jnp.bfloat16).astype(jnp.float32)
    w_bf = weight.astype(jnp.bfloat16).astype(jnp.float32)
    y_ref_bf16 = x_bf @ w_bf.T + bias
    assert jnp.allclose(y, y_ref_bf16, atol=1e-4, rtol=1e-4)

    # Loose sanity check against the full-f32 reference (bf16 operand rounding).
    y_ref_f32 = x @ weight.T + bias
    assert jnp.allclose(y, y_ref_f32, atol=5e-2, rtol=5e-2)

    # Also exercise a batched input with leading dims (F.linear semantics).
    x3 = jax.random.normal(k_x, (2, 5, in_channels), jnp.float32)
    y3 = jax.block_until_ready(linear_pallas(x3, wt, b2))
    assert y3.shape == (2, 5, out_channels)
    y3_ref = (x3.astype(jnp.bfloat16).astype(jnp.float32) @ w_bf.T) + bias
    assert jnp.allclose(y3, y3_ref, atol=1e-4, rtol=1e-4)

    print("KERNEL_OK")
</pallas_src>

<mosaic_0001>
module attributes {stable_mosaic.version = 11 : i64} {
  func.func @_linear_kernel(%arg0: i32, %arg1: i32, %arg2: i32, %arg3: memref<16x128xf32, #tpu.memory_space<vmem>>, %arg4: memref<128x128xbf16, #tpu.memory_space<vmem>>, %arg5: memref<1x128xf32, #tpu.memory_space<vmem>>, %arg6: memref<16x128xf32, #tpu.memory_space<vmem>>) attributes {dimension_semantics = [#tpu.dimension_semantics<parallel>, #tpu.dimension_semantics<parallel>, #tpu.dimension_semantics<arbitrary>], iteration_bounds = array<i64: 1, 1, 1>, scalar_prefetch = 0 : i64, scratch_operands = 0 : i64, tpu.core_type = #tpu.core_type<tc>, window_params = [{transform_indices = @transform_0, window_bounds = array<i64: 16, 128>}, {transform_indices = @transform_1, window_bounds = array<i64: 128, 128>}, {transform_indices = @transform_2, window_bounds = array<i64: 1, 128>}, {transform_indices = @transform_3, window_bounds = array<i64: 16, 128>}]} {
    %c0_i32 = arith.constant 0 : i32
    %0 = arith.cmpi eq, %arg2, %c0_i32 : i32
    %1 = arith.extui %0 : i1 to i32
    %c0_i32_0 = arith.constant 0 : i32
    %2 = arith.cmpi ne, %1, %c0_i32_0 : i32
    scf.if %2 {
      %c0_8 = arith.constant 0 : index
      %c0_9 = arith.constant 0 : index
      %10 = vector.load %arg5[%c0_8, %c0_9] : memref<1x128xf32, #tpu.memory_space<vmem>>, vector<1x128xf32>
      %11 = vector.shape_cast %10 : vector<1x128xf32> to vector<1x128xf32>
      %12 = vector.broadcast %11 : vector<1x128xf32> to vector<16x128xf32>
      %c0_10 = arith.constant 0 : index
      %c0_11 = arith.constant 0 : index
      %13 = vector.load %arg6[%c0_10, %c0_11] : memref<16x128xf32, #tpu.memory_space<vmem>>, vector<16x128xf32>
      tpu.vector_store %arg6[%c0_10, %c0_11], %12 {strides = array<i32>} : memref<16x128xf32, #tpu.memory_space<vmem>>, vector<16x128xf32>,
    } else {
    }
    %c0 = arith.constant 0 : index
    %c0_1 = arith.constant 0 : index
    %3 = vector.load %arg6[%c0, %c0_1] : memref<16x128xf32, #tpu.memory_space<vmem>>, vector<16x128xf32>
    %c0_2 = arith.constant 0 : index
    %c0_3 = arith.constant 0 : index
    %4 = vector.load %arg3[%c0_2, %c0_3] : memref<16x128xf32, #tpu.memory_space<vmem>>, vector<16x128xf32>
    %5 = arith.truncf %4 : vector<16x128xf32> to vector<16x128xbf16>
    %c0_4 = arith.constant 0 : index
    %c0_5 = arith.constant 0 : index
    %6 = vector.load %arg4[%c0_4, %c0_5] : memref<128x128xbf16, #tpu.memory_space<vmem>>, vector<128x128xbf16>
    %cst = arith.constant dense<0.000000e+00> : vector<16x128xf32>
    %7 = tpu.matmul %5, %6, %cst {dimension_numbers = #tpu.dot_dimension_numbers<[1], [0], [0], [1], [0, 0, 1, 1], [], []>} : vector<16x128xbf16>, vector<128x128xbf16>, vector<16x128xf32> -> vector<16x128xf32>
    %8 = arith.addf %3, %7 : vector<16x128xf32>
    %c0_6 = arith.constant 0 : index
    %c0_7 = arith.constant 0 : index
    %9 = vector.load %arg6[%c0_6, %c0_7] : memref<16x128xf32, #tpu.memory_space<vmem>>, vector<16x128xf32>
    tpu.vector_store %arg6[%c0_6, %c0_7], %8 {strides = array<i32>} : memref<16x128xf32, #tpu.memory_space<vmem>>, vector<16x128xf32>,
    return
  }
  func.func @transform_0(%arg0: i32, %arg1: i32, %arg2: i32) -> (i32, i32) {
    %c0_i32 = arith.constant 0 : i32
    return %arg0, %arg2 : i32, i32
  }
  func.func @transform_1(%arg0: i32, %arg1: i32, %arg2: i32) -> (i32, i32) {
    %c0_i32 = arith.constant 0 : i32
    return %arg2, %arg1 : i32, i32
  }
  func.func @transform_2(%arg0: i32, %arg1: i32, %arg2: i32) -> (i32, i32) {
    %c0_i32 = arith.constant 0 : i32
    %c0_i32_0 = arith.constant 0 : i32
    return %c0_i32, %arg1 : i32, i32
  }
  func.func @transform_3(%arg0: i32, %arg1: i32, %arg2: i32) -> (i32, i32) {
    %c0_i32 = arith.constant 0 : i32
    return %arg0, %arg1 : i32, i32
  }
}

</mosaic_0001>

<llo_original>
// kernel: tpu_custom_call.1
$region0: #{tpu_custom_call.1}
  #allocation0 [shape = 'u32[]', space=smem, size = 0x4, offset = 0x4, fixed_abs, tag = 'smem constant byte address 0x4 - core index']
  #allocation1 [shape = 'u32[144,128]{1,0:T(1,128)}', space=vmem, size = 0x12000, scoped, tag = 'internal scratch']
  %s0 = inlined_call_operand.hbm [shape: f32[16,128], index: 0, kind: input, shape index: {}]
  %s1 = inlined_call_operand.hbm [shape: bf16[128,128], index: 1, kind: input, shape index: {}]
  %s2 = inlined_call_operand.vmem [shape: f32[1,128], index: 2, kind: input, shape index: {}]
  %s3 = inlined_call_operand.hbm [shape: f32[16,128], index: 3, kind: output, shape index: {}]
  %s4 = sld [smem:[#allocation0]]
  $region34: #{tpu_custom_call.1} parent=0
    _
  %s6 = ssub.s32 1, %s4
  %s7 = scalar_select 0, %s6, %s4
  $region1: #{tpu_custom_call.1} parent=0
    #allocation2 [shape = 'u8[8192]{0}', space=vmem, size = 0x2000, scoped, tag = 'input window, operand 0, single buffered']
    #allocation3 [shape = 's32[1]{0}', space=sflag, size = 0x4, scoped, tag = 'scoped memory for tpu_custom_call.1']
    #allocation4 [shape = 's32[1]{0}', space=sflag, size = 0x4, scoped, tag = 'scoped memory for tpu_custom_call.1']
    #allocation5 [shape = 'u8[32768]{0}', space=vmem, size = 0x8000, scoped, tag = 'input window, operand 1, single buffered']
    #allocation6 [shape = 's32[1]{0}', space=sflag, size = 0x4, scoped, tag = 'scoped memory for tpu_custom_call.1']
    #allocation7 [shape = 'u8[8192]{0}', space=vmem, size = 0x2000, scoped, tag = 'output window, operand 0, single buffered']
    %8 = vsyncpa [#allocation3], 0
    %9 = vsyncpa [#allocation6], 0
    %10 = vsyncpa [#allocation4], 0
    // Predicated region
    $region2: #{tpu_custom_call.1} parent=1 // pred_check
      _
    $region3: #{tpu_custom_call.1} parent=1 // pred_check_branch
      %12 = sbr.rel (0) target = $region5
    $region4: #{tpu_custom_call.1} parent=1 // pred_region
      %s14 = ssub.s32 256, 256
      %15 = vsyncadd [#allocation3], %s14
      %s16 = sshll.u32 [#allocation2], 4
      %s17 = int_to_ptr.vmem [resolvable:$true] %s16
      %22 = dma.hbm_to_vmem [thread:$0]  %s0, 256, %s17, [#allocation3], 128, 128, 8
    $region5: #{tpu_custom_call.1} parent=1 // pred_fallthru
      _
    // Predicated region
    $region6: #{tpu_custom_call.1} parent=1 // pred_check
      _
    $region7: #{tpu_custom_call.1} parent=1 // pred_check_branch
      %24 = sbr.rel (0) target = $region9
    $region8: #{tpu_custom_call.1} parent=1 // pred_region
      %s26 = ssub.s32 1024, 1024
      %27 = vsyncadd [#allocation6], %s26
      %s28 = sshll.u32 [#allocation5], 4
      %s29 = int_to_ptr.vmem [resolvable:$true] %s28
      %34 = dma.hbm_to_vmem [thread:$0]  %s1, 1024, %s29, [#allocation6], 64, 64, 4
    $region9: #{tpu_custom_call.1} parent=1 // pred_fallthru
      _
    // Predicated region
    $region10: #{tpu_custom_call.1} parent=1 // pred_check
      _
    $region11: #{tpu_custom_call.1} parent=1 // pred_check_branch
      %36 = sbr.rel (0) target = $region13
    $region12: #{tpu_custom_call.1} parent=1 // pred_region
      _
    $region13: #{tpu_custom_call.1} parent=1 // pred_fallthru
      _
    // Predicated region
    $region14: #{tpu_custom_call.1} parent=1 // pred_check
      _
    $region15: #{tpu_custom_call.1} parent=1 // pred_check_branch
      %38 = sbr.rel (0) target = $region17
    $region16: #{tpu_custom_call.1} parent=1 // pred_region
      %39 = dma.done [#allocation3], 256
    $region17: #{tpu_custom_call.1} parent=1 // pred_fallthru
      _
    // Predicated region
    $region18: #{tpu_custom_call.1} parent=1 // pred_check
      _
    $region19: #{tpu_custom_call.1} parent=1 // pred_check_branch
      %41 = sbr.rel (0) target = $region21
    $region20: #{tpu_custom_call.1} parent=1 // pred_region
      %42 = dma.done [#allocation6], 1024
    $region21: #{tpu_custom_call.1} parent=1 // pred_fallthru
      _
    %p44 = scmp.eq.s32.totalorder 0, 0
    // Predicated region
    $region22: #{tpu_custom_call.1} parent=1 // pred_check
      %p45 = pneg %p44
    $region23: #{tpu_custom_call.1} parent=1 // pred_check_branch
      %47 = sbr.rel (%p45) target = $region25
    $region24: #{tpu_custom_call.1} parent=1 // pred_region
      %v48 = vld [vmem:[%s2] sm:$0x1]
      %v50 = vlaneseq
      %v51 = vshrl.u32 %v50, 7
      %v52 = vsub.s32 0, %v51
      %v53 = vrot.slane %v48, %v52
      %55 = vst [vmem:[#allocation7] sm:$0xff] %v53
      %56 = vst [vmem:[#allocation7 + $0x8] sm:$0xff] %v53
    $region25: #{tpu_custom_call.1} parent=1 // pred_fallthru
      _
    %v57 = vld [vmem:[#allocation7] sm:$0xff]
    %v58 = vld [vmem:[#allocation7 + $0x8] sm:$0xff]
    %v59 = vld [vmem:[#allocation2] sm:$0xff]
    %v60 = vld [vmem:[#allocation2 + $0x8] sm:$0xff]
    %v61 = vpack.c.bf16 %v60, %v59
    %v62 = vld [vmem:[#allocation5] sm:$0xf]
    %v63 = vld [vmem:[#allocation5 + $0x4] sm:$0xf]
    %v64 = vld [vmem:[#allocation5 + $0x8] sm:$0xf]
    %v65 = vld [vmem:[#allocation5 + $0xc] sm:$0xf]
    %v66 = vld [vmem:[#allocation5 + $0x10] sm:$0xf]
    %v67 = vld [vmem:[#allocation5 + $0x14] sm:$0xf]
    %v68 = vld [vmem:[#allocation5 + $0x18] sm:$0xf]
    %v69 = vld [vmem:[#allocation5 + $0x1c] sm:$0xf]
    %v70 = vld [vmem:[#allocation5 + $0x20] sm:$0xf]
    %v71 = vld [vmem:[#allocation5 + $0x24] sm:$0xf]
    %v72 = vld [vmem:[#allocation5 + $0x28] sm:$0xf]
    %v73 = vld [vmem:[#allocation5 + $0x2c] sm:$0xf]
    %v74 = vld [vmem:[#allocation5 + $0x30] sm:$0xf]
    %v75 = vld [vmem:[#allocation5 + $0x34] sm:$0xf]
    %v76 = vld [vmem:[#allocation5 + $0x38] sm:$0xf]
    %v77 = vld [vmem:[#allocation5 + $0x3c] sm:$0xf]
    %v94 = vunpack.c.l.b16 %v62
    %v95 = vunpack.c.l.b16 %v63
    %v96 = vunpack.c.l.b16 %v64
    %v97 = vunpack.c.l.b16 %v65
    %v98 = vunpack.c.l.b16 %v66
    %v99 = vunpack.c.l.b16 %v67
    %v100 = vunpack.c.l.b16 %v68
    %v101 = vunpack.c.l.b16 %v69
    %v102 = vunpack.c.l.b16 %v70
    %v103 = vunpack.c.l.b16 %v71
    %v104 = vunpack.c.l.b16 %v72
    %v105 = vunpack.c.l.b16 %v73
    %v106 = vunpack.c.l.b16 %v74
    %v107 = vunpack.c.l.b16 %v75
    %v108 = vunpack.c.l.b16 %v76
    %v109 = vunpack.c.l.b16 %v77
    %v110 = vpack.c.b16 %v95, %v94
    %v111 = vpack.c.b16 %v97, %v96
    %v112 = vpack.c.b16 %v99, %v98
    %v113 = vpack.c.b16 %v101, %v100
    %v114 = vpack.c.b16 %v103, %v102
    %v115 = vpack.c.b16 %v105, %v104
    %v116 = vpack.c.b16 %v107, %v106
    %v117 = vpack.c.b16 %v109, %v108
    %126 = vmatprep.subr.bf16.mxu0 0
    %127 = vmatpush1.bf16.msra.mxu0 %v117
    %128 = vmatprep.subr.bf16.mxu0 0
    %129 = vmatpush1.bf16.msra.mxu0 %v116
    %130 = vmatprep.subr.bf16.mxu0 0
    %131 = vmatpush1.bf16.msra.mxu0 %v115
    %132 = vmatprep.subr.bf16.mxu0 0
    %133 = vmatpush1.bf16.msra.mxu0 %v114
    %134 = vmatprep.subr.bf16.mxu0 0
    %135 = vmatpush1.bf16.msra.mxu0 %v113
    %136 = vmatprep.subr.bf16.mxu0 0
    %137 = vmatpush1.bf16.msra.mxu0 %v112
    %138 = vmatprep.subr.bf16.mxu0 0
    %139 = vmatpush1.bf16.msra.mxu0 %v111
    %140 = vmatprep.subr.bf16.mxu0 0
    %141 = vmatpush1.bf16.msra.mxu0 %v110
    %142 = vmatprep.subr.bf16.mxu0 0
    %143 = vmatpush2.bf16.msra.mxu0 0
    %144 = vmatprep.subr.bf16.mxu0 0
    %145 = vmatpush2.bf16.msra.mxu0 0
    %146 = vmatprep.subr.bf16.mxu0 0
    %147 = vmatpush2.bf16.msra.mxu0 0
    %148 = vmatprep.subr.bf16.mxu0 0
    %149 = vmatpush2.bf16.msra.mxu0 0
    %150 = vmatprep.subr.bf16.mxu0 0
    %151 = vmatpush2.bf16.msra.mxu0 0
    %152 = vmatprep.subr.bf16.mxu0 0
    %153 = vmatpush2.bf16.msra.mxu0 0
    %154 = vmatprep.subr.bf16.mxu0 0
    %155 = vmatpush2.bf16.msra.mxu0 0
    %156 = vmatprep.subr.bf16.mxu0 0
    %157 = vmatpush2.bf16.msra.mxu0 0
    %158 = vmatprep.mubr.bf16.mxu0 0
    %159 = vmatmul.mubr.bf16.gmra.mxu0 %v61
    %v160 = vpop.f32.mrf.mxu0
    %v161 = vadd.f32 0.0, %v160
    %v162 = vpop.f32.mrf.mxu0
    %v163 = vpop.f32.mrf.mxu0
    %v164 = vadd.f32 0.0, %v163
    %v165 = vpop.f32.mrf.mxu0
    %166 = vdwg.mxu0
    %v167 = vadd.f32 %v57, %v161
    %v168 = vadd.f32 %v58, %v164
    %169 = vst [vmem:[#allocation7] sm:$0xff] %v167
    %170 = vst [vmem:[#allocation7 + $0x8] sm:$0xff] %v168
    // Predicated region
    $region26: #{tpu_custom_call.1} parent=1 // pred_check
      _
    $region27: #{tpu_custom_call.1} parent=1 // pred_check_branch
      %172 = sbr.rel (0) target = $region29
    $region28: #{tpu_custom_call.1} parent=1 // pred_region
      %s174 = ssub.s32 256, 256
      %175 = vsyncadd [#allocation4], %s174
      %s176 = sshll.u32 [#allocation7], 4
      %s177 = int_to_ptr.vmem [resolvable:$true] %s176
      %182 = dma.vmem_to_hbm [thread:$0]  %s177, 256, %s3, [#allocation4], 128, 128, 8
    $region29: #{tpu_custom_call.1} parent=1 // pred_fallthru
      _
    // Predicated region
    $region30: #{tpu_custom_call.1} parent=1 // pred_check
      _
    $region31: #{tpu_custom_call.1} parent=1 // pred_check_branch
      %184 = sbr.rel (0) target = $region33
    $region32: #{tpu_custom_call.1} parent=1 // pred_region
      %185 = dma.done [#allocation4], 256
    $region33: #{tpu_custom_call.1} parent=1 // pred_fallthru
      _
    %186 = vsyncpa [#allocation3], 1
    %187 = vsyncpa [#allocation6], 1
    %188 = vsyncpa [#allocation4], 1

</llo_original>
